<compile_context>
chip_gen: v7x
topology: tpu7x:2x2x1
jax: 0.10.0
libtpu: 0.0.40
codegen_flags: <defaults>
</compile_context>

<pallas_src>
import functools

import jax
import jax.numpy as jnp
from jax import lax
from jax.experimental import pallas as pl
from jax.experimental.pallas import tpu as pltpu


# ---------------------------------------------------------------------------
# Kernel
# ---------------------------------------------------------------------------
def _avg_pool_pad_kernel(Ho, sel_both_ref, sel_even_ref, x_ref, o_ref):
    """One grid step: bm = gb*Ho output rows covering gb whole (n, c) planes.

    x_ref        (bm, 2W): row j=(g,r); lanes [0,W)=x[g,2r,:], [W,2W)=x[g,2r+1,:]
    sel_both_ref (2W, Wo): 0/1 matrix -> 3-tap/stride-2 sums of rows 2r and 2r+1
    sel_even_ref (2W, Wo): 0/1 matrix -> 3-tap/stride-2 sums of row 2r only
    o_ref        (bm, Wo)
    """
    bm = x_ref.shape[0]
    Wo = o_ref.shape[1]
    f32 = jnp.float32

    xb = x_ref[...].astype(f32)

    # Horizontal (lane) direction on the MXU: one large 2-D matmul per block.
    tc = jnp.dot(xb, sel_both_ref[...], preferred_element_type=f32)  # rows 2r + 2r+1
    te = jnp.dot(xb, sel_even_ref[...], preferred_element_type=f32)  # row 2r only

    # Per-row / per-col divisor (count_include_pad=False): 3, except 2 on the
    # bottom / right edge.  Built from iotas; bm is a multiple of Ho so the
    # local row index mod Ho is the true output row r.
    r = lax.broadcasted_iota(jnp.int32, (bm, Wo), 0) % Ho
    s = lax.broadcasted_iota(jnp.int32, (bm, Wo), 1)
    last_r = r == (Ho - 1)
    last_s = s == (Wo - 1)
    inv = jnp.where(last_r, f32(0.5), f32(1.0 / 3.0)) * jnp.where(
        last_s, f32(0.5), f32(1.0 / 3.0))

    # Vertical (sublane) direction: window rows are 2r, 2r+1 (both already in
    # tc) and 2r+2, which is exactly the *next* row's even-row sum te[j+1].
    # That third row exists only when r < Ho-1; jnp.where (a select) keeps any
    # garbage from a partial last block or a group boundary out of valid rows.
    if bm > 1:
        keep = jnp.logical_not(last_r)
        acc_hi = tc[: bm - 1, :] + jnp.where(keep[: bm - 1, :], te[1:, :], f32(0.0))
        o_ref[pl.ds(0, bm - 1), :] = (acc_hi * inv[: bm - 1, :]).astype(o_ref.dtype)
    # The block's last row always has r == Ho-1 (bm multiple of Ho): no 3rd row.
    o_ref[pl.ds(bm - 1, 1), :] = (tc[bm - 1:, :] * inv[bm - 1:, :]).astype(o_ref.dtype)


# ---------------------------------------------------------------------------
# Block sizing (padded-VMEM aware, generation aware)
# ---------------------------------------------------------------------------
def _round_up(v, m):
    return -(-v // m) * m


def _padded_block_bytes(bm, in_lanes, out_lanes, in_dtype, out_dtype):
    """VMEM for one input + one output block on padded (sublane, lane) tiles,
    including Pallas' 2x double buffering."""
    def one(lanes, dtype):
        isz = jnp.dtype(dtype).itemsize
        sub = 8 * max(1, 4 // isz)              # f32 -> 8, bf16 -> 16, int8 -> 32
        return _round_up(bm, sub) * _round_up(lanes, 128) * isz
    return 2 * (one(in_lanes, in_dtype) + one(out_lanes, out_dtype))


def _vmem_budget_and_limit():
    """Generation-aware scoped-VMEM limit and pipelined-block budget."""
    cap = 64 * 1024 * 1024                      # conservative default: v7x per-core
    try:
        info = pltpu.get_tpu_info()
        cap = int(getattr(info, "vmem_capacity_bytes", cap))
    except Exception:
        pass
    limit = min(int(cap * 0.75), 100 * 1024 * 1024)   # 48 MiB on v7x, 96 MiB v5e/v6e
    budget = int(limit * 0.6)                   # rest = headroom for internal scratch
    return budget, limit


def _pick_group_block(G, Ho, in_lanes, out_lanes, in_dtype, out_dtype, budget,
                      row_cap=4096):
    """Largest number of (n, c) planes per grid step whose padded, double-
    buffered blocks fit `budget`; rows per block capped so large problems still
    produce several (megacore-shardable) grid steps.  Prefers a sublane-aligned
    (bm % 8 == 0) row count."""
    gb = 1
    for cand in range(1, G + 1):
        bm = cand * Ho
        if cand > 1 and bm > row_cap:
            break
        if _padded_block_bytes(bm, in_lanes, out_lanes, in_dtype, out_dtype) > budget:
            break
        gb = cand
    if gb < G and (gb * Ho) % 8 != 0:
        for cand in range(gb, 0, -1):
            if (cand * Ho) % 8 == 0:
                gb = cand
                break
    return gb


# ---------------------------------------------------------------------------
# Wrapper
# ---------------------------------------------------------------------------
@jax.jit
def avg_pool_pad(x):
    """AvgPoolPad forward. x: (N, C, H, W), H and W even. Returns (N, C, H/2, W/2)."""
    N, C, H, W = x.shape
    assert H % 2 == 0 and W % 2 == 0, "AvgPoolPad kernel expects even spatial dims"
    Ho, Wo = H // 2, W // 2
    G = N * C
    R = G * Ho

    # Free contiguous reshape (no HBM copy): row j=(g,r) packs x rows 2r, 2r+1.
    x2 = x.reshape(R, 2 * W)

    # Tiny 0/1 3-banded selection matrices (resident in VMEM across the grid).
    w_idx = jnp.arange(W, dtype=jnp.int32)[:, None]
    ws = 2 * jnp.arange(Wo, dtype=jnp.int32)[None, :]
    aw = ((w_idx >= ws) & (w_idx <= ws + 2)).astype(jnp.float32)       # (W, Wo)
    sel_both = jnp.concatenate([aw, aw], axis=0)                       # (2W, Wo)
    sel_even = jnp.concatenate([aw, jnp.zeros_like(aw)], axis=0)       # (2W, Wo)

    budget, vmem_limit = _vmem_budget_and_limit()
    gb = _pick_group_block(G, Ho, 2 * W, Wo, x.dtype, x.dtype, budget)
    bm = gb * Ho
    grid = (pl.cdiv(G, gb),)

    out2 = pl.pallas_call(
        functools.partial(_avg_pool_pad_kernel, Ho),
        out_shape=jax.ShapeDtypeStruct((R, Wo), x.dtype),
        grid=grid,
        in_specs=[
            pl.BlockSpec((2 * W, Wo), lambda i: (0, 0)),   # sel_both (resident)
            pl.BlockSpec((2 * W, Wo), lambda i: (0, 0)),   # sel_even (resident)
            pl.BlockSpec((bm, 2 * W), lambda i: (i, 0)),   # packed input rows
        ],
        out_specs=pl.BlockSpec((bm, Wo), lambda i: (i, 0)),
        compiler_params=pltpu.CompilerParams(
            dimension_semantics=("parallel",),
            vmem_limit_bytes=vmem_limit,
        ),
    )(sel_both, sel_even, x2)

    return out2.reshape(N, C, Ho, Wo)


# ---------------------------------------------------------------------------
# Pure-JAX reference (verification only)
# ---------------------------------------------------------------------------
def _reference(x):
    xp = jnp.pad(x, ((0, 0), (0, 0), (1, 0), (1, 0)))  # ZeroPad2d((1,0,1,0))
    win, strd = (1, 1, 3, 3), (1, 1, 2, 2)
    pad = ((0, 0), (0, 0), (1, 1), (1, 1))
    sums = lax.reduce_window(xp, 0.0, lax.add, win, strd, pad)
    cnts = lax.reduce_window(jnp.ones_like(xp), 0.0, lax.add, win, strd, pad)
    pool = sums / cnts  # count_include_pad=False
    return pool[:, :, 1:, 1:]


if __name__ == "__main__":
    key = jax.random.PRNGKey(0)
    x = jax.random.normal(key, (2, 4, 16, 16), dtype=jnp.float32)

    out = jax.block_until_ready(avg_pool_pad(x))
    ref = jax.block_until_ready(_reference(x))

    assert out.shape == (2, 4, 8, 8), out.shape
    err = float(jnp.max(jnp.abs(out - ref)))
    # Bound is loose enough to tolerate a reduced-precision MXU pass on the
    # f32 selection matmul, but tight enough to catch any window / mask /
    # divisor indexing bug (those produce O(0.1..1) errors).
    assert err < 2e-2, err
    print("KERNEL_OK")
</pallas_src>

<mosaic_0001>
module attributes {stable_mosaic.version = 11 : i64} {
  func.func @_avg_pool_pad_kernel(%arg0: i32, %arg1: memref<32x8xf32, #tpu.memory_space<vmem>>, %arg2: memref<32x8xf32, #tpu.memory_space<vmem>>, %arg3: memref<64x32xf32, #tpu.memory_space<vmem>>, %arg4: memref<64x8xf32, #tpu.memory_space<vmem>>) attributes {dimension_semantics = [#tpu.dimension_semantics<parallel>], iteration_bounds = array<i64: 1>, scalar_prefetch = 0 : i64, scratch_operands = 0 : i64, tpu.core_type = #tpu.core_type<tc>, window_params = [{pipeline_mode = #tpu.pipeline_mode<synchronous>, transform_indices = @transform_0, window_bounds = array<i64: 32, 8>}, {pipeline_mode = #tpu.pipeline_mode<synchronous>, transform_indices = @transform_1, window_bounds = array<i64: 32, 8>}, {transform_indices = @transform_2, window_bounds = array<i64: 64, 32>}, {transform_indices = @transform_3, window_bounds = array<i64: 64, 8>}]} {
    %c0 = arith.constant 0 : index
    %c0_0 = arith.constant 0 : index
    %0 = vector.load %arg3[%c0, %c0_0] : memref<64x32xf32, #tpu.memory_space<vmem>>, vector<64x32xf32>
    %c0_1 = arith.constant 0 : index
    %c0_2 = arith.constant 0 : index
    %1 = vector.load %arg1[%c0_1, %c0_2] : memref<32x8xf32, #tpu.memory_space<vmem>>, vector<32x8xf32>
    %cst = arith.constant dense<0.000000e+00> : vector<64x8xf32>
    %2 = tpu.matmul %0, %1, %cst {dimension_numbers = #tpu.dot_dimension_numbers<[1], [0], [0], [1], [0, 0, 1, 1], [], []>} : vector<64x32xf32>, vector<32x8xf32>, vector<64x8xf32> -> vector<64x8xf32>
    %c0_3 = arith.constant 0 : index
    %c0_4 = arith.constant 0 : index
    %3 = vector.load %arg2[%c0_3, %c0_4] : memref<32x8xf32, #tpu.memory_space<vmem>>, vector<32x8xf32>
    %cst_5 = arith.constant dense<0.000000e+00> : vector<64x8xf32>
    %4 = tpu.matmul %0, %3, %cst_5 {dimension_numbers = #tpu.dot_dimension_numbers<[1], [0], [0], [1], [0, 0, 1, 1], [], []>} : vector<64x32xf32>, vector<32x8xf32>, vector<64x8xf32> -> vector<64x8xf32>
    %5 = tpu.iota {dimensions = array<i32: 0>} : vector<64x8xi32>
    %c8_i32 = arith.constant 8 : i32
    %c0_i32 = arith.constant 0 : i32
    %6 = arith.cmpi eq, %c8_i32, %c0_i32 : i32
    %c1_i32 = arith.constant 1 : i32
    %7 = arith.select %6, %c1_i32, %c8_i32 : i32
    %8 = vector.broadcast %7 : i32 to vector<64x8xi32>
    %9 = arith.remsi %5, %8 : vector<64x8xi32>
    %c0_i32_6 = arith.constant 0 : i32
    %10 = vector.broadcast %c0_i32_6 : i32 to vector<64x8xi32>
    %11 = arith.cmpi ne, %9, %10 : vector<64x8xi32>
    %c0_i32_7 = arith.constant 0 : i32
    %12 = vector.broadcast %c0_i32_7 : i32 to vector<64x8xi32>
    %13 = arith.cmpi slt, %9, %12 : vector<64x8xi32>
    %c0_i32_8 = arith.constant 0 : i32
    %14 = arith.cmpi slt, %7, %c0_i32_8 : i32
    %15 = vector.broadcast %14 : i1 to vector<64x8xi1>
    %16 = vector.broadcast %15 : vector<64x8xi1> to vector<64x8xi1>
    %17 = arith.xori %13, %16 : vector<64x8xi1>
    %18 = arith.andi %17, %11 : vector<64x8xi1>
    %19 = vector.broadcast %7 : i32 to vector<64x8xi32>
    %20 = arith.addi %9, %19 : vector<64x8xi32>
    %21 = arith.select %18, %20, %9 : vector<64x8xi1>, vector<64x8xi32>
    %22 = tpu.iota {dimensions = array<i32: 1>} : vector<64x8xi32>
    %c7_i32 = arith.constant 7 : i32
    %23 = vector.broadcast %c7_i32 : i32 to vector<64x8xi32>
    %24 = arith.cmpi eq, %21, %23 : vector<64x8xi32>
    %c7_i32_9 = arith.constant 7 : i32
    %25 = vector.broadcast %c7_i32_9 : i32 to vector<64x8xi32>
    %26 = arith.cmpi eq, %22, %25 : vector<64x8xi32>
    %cst_10 = arith.constant 5.000000e-01 : f32
    %cst_11 = arith.constant 0.333333343 : f32
    %27 = vector.broadcast %cst_10 : f32 to vector<64x8xf32>
    %28 = vector.broadcast %cst_11 : f32 to vector<64x8xf32>
    %29 = arith.select %24, %27, %28 : vector<64x8xi1>, vector<64x8xf32>
    %cst_12 = arith.constant 5.000000e-01 : f32
    %cst_13 = arith.constant 0.333333343 : f32
    %30 = vector.broadcast %cst_12 : f32 to vector<64x8xf32>
    %31 = vector.broadcast %cst_13 : f32 to vector<64x8xf32>
    %32 = arith.select %26, %30, %31 : vector<64x8xi1>, vector<64x8xf32>
    %33 = arith.mulf %29, %32 : vector<64x8xf32>
    %cst_14 = arith.constant dense<true> : vector<64x8xi1>
    %34 = arith.xori %24, %cst_14 : vector<64x8xi1>
    %35 = vector.extract_strided_slice %2 {offsets = [0, 0], sizes = [63, 8], strides = [1, 1]} : vector<64x8xf32> to vector<63x8xf32>
    %36 = vector.extract_strided_slice %34 {offsets = [0, 0], sizes = [63, 8], strides = [1, 1]} : vector<64x8xi1> to vector<63x8xi1>
    %37 = vector.extract_strided_slice %4 {offsets = [1, 0], sizes = [63, 8], strides = [1, 1]} : vector<64x8xf32> to vector<63x8xf32>
    %cst_15 = arith.constant 0.000000e+00 : f32
    %38 = vector.broadcast %cst_15 : f32 to vector<63x8xf32>
    %39 = arith.select %36, %37, %38 : vector<63x8xi1>, vector<63x8xf32>
    %40 = arith.addf %35, %39 : vector<63x8xf32>
    %41 = vector.extract_strided_slice %33 {offsets = [0, 0], sizes = [63, 8], strides = [1, 1]} : vector<64x8xf32> to vector<63x8xf32>
    %42 = arith.mulf %40, %41 : vector<63x8xf32>
    %c0_16 = arith.constant 0 : index
    %c0_17 = arith.constant 0 : index
    %43 = vector.load %arg4[%c0_16, %c0_17] : memref<64x8xf32, #tpu.memory_space<vmem>>, vector<63x8xf32>
    tpu.vector_store %arg4[%c0_16, %c0_17], %42 {strides = array<i32>} : memref<64x8xf32, #tpu.memory_space<vmem>>, vector<63x8xf32>,
    %44 = vector.extract_strided_slice %2 {offsets = [63, 0], sizes = [1, 8], strides = [1, 1]} : vector<64x8xf32> to vector<1x8xf32>
    %45 = vector.extract_strided_slice %33 {offsets = [63, 0], sizes = [1, 8], strides = [1, 1]} : vector<64x8xf32> to vector<1x8xf32>
    %46 = arith.mulf %44, %45 : vector<1x8xf32>
    %c63 = arith.constant 63 : index
    %c0_18 = arith.constant 0 : index
    %47 = vector.load %arg4[%c63, %c0_18] : memref<64x8xf32, #tpu.memory_space<vmem>>, vector<1x8xf32>
    tpu.vector_store %arg4[%c63, %c0_18], %46 {strides = array<i32>} : memref<64x8xf32, #tpu.memory_space<vmem>>, vector<1x8xf32>,
    return
  }
  func.func @transform_0(%arg0: i32) -> (i32, i32) {
    %c0_i32 = arith.constant 0 : i32
    %c0_i32_0 = arith.constant 0 : i32
    %c0_i32_1 = arith.constant 0 : i32
    return %c0_i32, %c0_i32_0 : i32, i32
  }
  func.func @transform_1(%arg0: i32) -> (i32, i32) {
    %c0_i32 = arith.constant 0 : i32
    %c0_i32_0 = arith.constant 0 : i32
    %c0_i32_1 = arith.constant 0 : i32
    return %c0_i32, %c0_i32_0 : i32, i32
  }
  func.func @transform_2(%arg0: i32) -> (i32, i32) {
    %c0_i32 = arith.constant 0 : i32
    %c0_i32_0 = arith.constant 0 : i32
    return %arg0, %c0_i32 : i32, i32
  }
  func.func @transform_3(%arg0: i32) -> (i32, i32) {
    %c0_i32 = arith.constant 0 : i32
    %c0_i32_0 = arith.constant 0 : i32
    return %arg0, %c0_i32 : i32, i32
  }
}

</mosaic_0001>

<llo_original>
// kernel: avg_pool_pad.1
$region0: #{avg_pool_pad.1}
  #allocation0 [shape = 'u32[]', space=smem, size = 0x4, offset = 0x4, fixed_abs, tag = 'smem constant byte address 0x4 - core index']
  #allocation1 [shape = 'u32[144,128]{1,0:T(1,128)}', space=vmem, size = 0x12000, scoped, tag = 'internal scratch']
  %s0 = inlined_call_operand.vmem [shape: f32[32,8], index: 0, kind: input, shape index: {}]
  %s1 = inlined_call_operand.vmem [shape: f32[32,8], index: 1, kind: input, shape index: {}]
  %s2 = inlined_call_operand.vmem [shape: f32[64,32], index: 2, kind: input, shape index: {}]
  %s3 = inlined_call_operand.hbm [shape: f32[64,8], index: 3, kind: output, shape index: {}]
  %s4 = sld [smem:[#allocation0]]
  $region22: #{avg_pool_pad.1} parent=0
    _
  %s6 = ssub.s32 1, %s4
  %s7 = scalar_select 0, %s6, %s4
  $region1: #{avg_pool_pad.1} parent=0
    #allocation2 [shape = 'u8[32768]{0}', space=vmem, size = 0x8000, scoped, tag = 'output window, operand 0, single buffered']
    #allocation3 [shape = 's32[1]{0}', space=sflag, size = 0x4, scoped, tag = 'scoped memory for avg_pool_pad.1']
    %8 = vsyncpa [#allocation3], 0
    // Predicated region
    $region2: #{avg_pool_pad.1} parent=1 // pred_check
      _
    $region3: #{avg_pool_pad.1} parent=1 // pred_check_branch
      %10 = sbr.rel (0) target = $region5
    $region4: #{avg_pool_pad.1} parent=1 // pred_region
      _
    $region5: #{avg_pool_pad.1} parent=1 // pred_fallthru
      _
    // Predicated region
    $region6: #{avg_pool_pad.1} parent=1 // pred_check
      _
    $region7: #{avg_pool_pad.1} parent=1 // pred_check_branch
      %12 = sbr.rel (0) target = $region9
    $region8: #{avg_pool_pad.1} parent=1 // pred_region
      _
    $region9: #{avg_pool_pad.1} parent=1 // pred_fallthru
      _
    // Predicated region
    $region10: #{avg_pool_pad.1} parent=1 // pred_check
      _
    $region11: #{avg_pool_pad.1} parent=1 // pred_check_branch
      %14 = sbr.rel (0) target = $region13
    $region12: #{avg_pool_pad.1} parent=1 // pred_region
      _
    $region13: #{avg_pool_pad.1} parent=1 // pred_fallthru
      _
    %v15 = vld [vmem:[%s2] sm:$0xff]
    %v16 = vld [vmem:[%s2 + $0x8] sm:$0xff]
    %v17 = vld [vmem:[%s2 + $0x10] sm:$0xff]
    %v18 = vld [vmem:[%s2 + $0x18] sm:$0xff]
    %v19 = vld [vmem:[%s2 + $0x20] sm:$0xff]
    %v20 = vld [vmem:[%s2 + $0x28] sm:$0xff]
    %v21 = vld [vmem:[%s2 + $0x30] sm:$0xff]
    %v22 = vld [vmem:[%s2 + $0x38] sm:$0xff]
    %v23 = vld [vmem:[%s0] sm:$0xff]
    %v24 = vld [vmem:[%s0 + $0x8] sm:$0xff]
    %v25 = vld [vmem:[%s0 + $0x10] sm:$0xff]
    %v26 = vld [vmem:[%s0 + $0x18] sm:$0xff]
    %vm27 = vcmask 261120
    %v29 = vsel %vm27, %v15, 0
    %v32 = vsel %vm27, %v16, 0
    %v35 = vsel %vm27, %v17, 0
    %v38 = vsel %vm27, %v18, 0
    %v41 = vsel %vm27, %v19, 0
    %v44 = vsel %vm27, %v20, 0
    %v47 = vsel %vm27, %v21, 0
    %v50 = vsel %vm27, %v22, 0
    %52 = vmatprep.subr.mxu0 0.0
    %53 = vmatpush1.msra.mxu0 %v23
    %54 = vmatprep.subr.mxu0 0.0
    %55 = vmatpush1.msra.mxu0 %v24
    %56 = vmatprep.subr.mxu0 0.0
    %57 = vmatpush1.msra.mxu0 %v25
    %58 = vmatprep.subr.mxu0 0.0
    %59 = vmatpush1.msra.mxu0 %v26
    %60 = vmatprep.subr.mxu0 0.0
    %61 = vmatpush1.msra.mxu0 0.0
    %62 = vmatprep.subr.mxu0 0.0
    %63 = vmatpush1.msra.mxu0 0.0
    %64 = vmatprep.subr.mxu0 0.0
    %65 = vmatpush1.msra.mxu0 0.0
    %66 = vmatprep.subr.mxu0 0.0
    %67 = vmatpush1.msra.mxu0 0.0
    %68 = vmatprep.subr.mxu0 0.0
    %69 = vmatpush1.msra.mxu0 0.0
    %70 = vmatprep.subr.mxu0 0.0
    %71 = vmatpush1.msra.mxu0 0.0
    %72 = vmatprep.subr.mxu0 0.0
    %73 = vmatpush1.msra.mxu0 0.0
    %74 = vmatprep.subr.mxu0 0.0
    %75 = vmatpush1.msra.mxu0 0.0
    %76 = vmatprep.subr.mxu0 0.0
    %77 = vmatpush1.msra.mxu0 0.0
    %78 = vmatprep.subr.mxu0 0.0
    %79 = vmatpush1.msra.mxu0 0.0
    %80 = vmatprep.subr.mxu0 0.0
    %81 = vmatpush1.msra.mxu0 0.0
    %82 = vmatprep.subr.mxu0 0.0
    %83 = vmatpush1.msra.mxu0 0.0
    %84 = vmatprep.subr.mxu0 0.0
    %85 = vmatpush1.msra.mxu0 0.0
    %86 = vmatprep.subr.mxu0 0.0
    %87 = vmatpush1.msra.mxu0 0.0
    %88 = vmatprep.subr.mxu0 0.0
    %89 = vmatpush1.msra.mxu0 0.0
    %90 = vmatprep.subr.mxu0 0.0
    %91 = vmatpush1.msra.mxu0 0.0
    %92 = vmatprep.subr.mxu0 0.0
    %93 = vmatpush1.msra.mxu0 0.0
    %94 = vmatprep.subr.mxu0 0.0
    %95 = vmatpush1.msra.mxu0 0.0
    %96 = vmatprep.subr.mxu0 0.0
    %97 = vmatpush1.msra.mxu0 0.0
    %98 = vmatprep.subr.mxu0 0.0
    %99 = vmatpush1.msra.mxu0 0.0
    %100 = vmatprep.subr.mxu0 0.0
    %101 = vmatpush1.msra.mxu0 0.0
    %102 = vmatprep.subr.mxu0 0.0
    %103 = vmatpush1.msra.mxu0 0.0
    %104 = vmatprep.subr.mxu0 0.0
    %105 = vmatpush1.msra.mxu0 0.0
    %106 = vmatprep.subr.mxu0 0.0
    %107 = vmatpush1.msra.mxu0 0.0
    %108 = vmatprep.subr.mxu0 0.0
    %109 = vmatpush1.msra.mxu0 0.0
    %110 = vmatprep.subr.mxu0 0.0
    %111 = vmatpush1.msra.mxu0 0.0
    %112 = vmatprep.subr.mxu0 0.0
    %113 = vmatpush1.msra.mxu0 0.0
    %114 = vmatprep.subr.mxu0 0.0
    %115 = vmatpush1.msra.mxu0 0.0
    %116 = vmatprep.mubr.f32.mxu0 0.0
    %117 = vmatmul.mubr.f32.gmra.mrb[0].mxu0 %v29
    %v118 = vpop.f32.mrb[0].mxu0
    %v119 = vadd.f32 0.0, %v118
    %v120 = vpop.f32.mrb[0].mxu0
    %121 = vmatprep.mubr.f32.mxu0 0.0
    %122 = vmatmul.mubr.f32.gmra.mrb[0].mxu0 %v32
    %v123 = vpop.f32.mrb[0].mxu0
    %v124 = vadd.f32 0.0, %v123
    %v125 = vpop.f32.mrb[0].mxu0
    %126 = vmatprep.mubr.f32.mxu0 0.0
    %127 = vmatmul.mubr.f32.gmra.mrb[0].mxu0 %v35
    %v128 = vpop.f32.mrb[0].mxu0
    %v129 = vadd.f32 0.0, %v128
    %v130 = vpop.f32.mrb[0].mxu0
    %131 = vmatprep.mubr.f32.mxu0 0.0
    %132 = vmatmul.mubr.f32.gmra.mrb[0].mxu0 %v38
    %v133 = vpop.f32.mrb[0].mxu0
    %v134 = vadd.f32 0.0, %v133
    %v135 = vpop.f32.mrb[0].mxu0
    %136 = vmatprep.mubr.f32.mxu0 0.0
    %137 = vmatmul.mubr.f32.gmra.mrb[0].mxu0 %v41
    %v138 = vpop.f32.mrb[0].mxu0
    %v139 = vadd.f32 0.0, %v138
    %v140 = vpop.f32.mrb[0].mxu0
    %141 = vmatprep.mubr.f32.mxu0 0.0
    %142 = vmatmul.mubr.f32.gmra.mrb[0].mxu0 %v44
    %v143 = vpop.f32.mrb[0].mxu0
    %v144 = vadd.f32 0.0, %v143
    %v145 = vpop.f32.mrb[0].mxu0
    %146 = vmatprep.mubr.f32.mxu0 0.0
    %147 = vmatmul.mubr.f32.gmra.mrb[0].mxu0 %v47
    %v148 = vpop.f32.mrb[0].mxu0
    %v149 = vadd.f32 0.0, %v148
    %v150 = vpop.f32.mrb[0].mxu0
    %151 = vmatprep.mubr.f32.mxu0 0.0
    %152 = vmatmul.mubr.f32.gmra.mrb[0].mxu0 %v50
    %v153 = vpop.f32.mrb[0].mxu0
    %v154 = vadd.f32 0.0, %v153
    %v155 = vpop.f32.mrb[0].mxu0
    %156 = vdwg.mxu0
    %v157 = vld [vmem:[%s1] sm:$0xff]
    %v158 = vld [vmem:[%s1 + $0x8] sm:$0xff]
    %v159 = vld [vmem:[%s1 + $0x10] sm:$0xff]
    %v160 = vld [vmem:[%s1 + $0x18] sm:$0xff]
    %161 = vmatprep.subr.mxu0 0.0
    %162 = vmatpush1.msra.mxu0 %v157
    %163 = vmatprep.subr.mxu0 0.0
    %164 = vmatpush1.msra.mxu0 %v158
    %165 = vmatprep.subr.mxu0 0.0
    %166 = vmatpush1.msra.mxu0 %v159
    %167 = vmatprep.subr.mxu0 0.0
    %168 = vmatpush1.msra.mxu0 %v160
    %169 = vmatprep.subr.mxu0 0.0
    %170 = vmatpush1.msra.mxu0 0.0
    %171 = vmatprep.subr.mxu0 0.0
    %172 = vmatpush1.msra.mxu0 0.0
    %173 = vmatprep.subr.mxu0 0.0
    %174 = vmatpush1.msra.mxu0 0.0
    %175 = vmatprep.subr.mxu0 0.0
    %176 = vmatpush1.msra.mxu0 0.0
    %177 = vmatprep.subr.mxu0 0.0
    %178 = vmatpush1.msra.mxu0 0.0
    %179 = vmatprep.subr.mxu0 0.0
    %180 = vmatpush1.msra.mxu0 0.0
    %181 = vmatprep.subr.mxu0 0.0
    %182 = vmatpush1.msra.mxu0 0.0
    %183 = vmatprep.subr.mxu0 0.0
    %184 = vmatpush1.msra.mxu0 0.0
    %185 = vmatprep.subr.mxu0 0.0
    %186 = vmatpush1.msra.mxu0 0.0
    %187 = vmatprep.subr.mxu0 0.0
    %188 = vmatpush1.msra.mxu0 0.0
    %189 = vmatprep.subr.mxu0 0.0
    %190 = vmatpush1.msra.mxu0 0.0
    %191 = vmatprep.subr.mxu0 0.0
    %192 = vmatpush1.msra.mxu0 0.0
    %193 = vmatprep.subr.mxu0 0.0
    %194 = vmatpush1.msra.mxu0 0.0
    %195 = vmatprep.subr.mxu0 0.0
    %196 = vmatpush1.msra.mxu0 0.0
    %197 = vmatprep.subr.mxu0 0.0
    %198 = vmatpush1.msra.mxu0 0.0
    %199 = vmatprep.subr.mxu0 0.0
    %200 = vmatpush1.msra.mxu0 0.0
    %201 = vmatprep.subr.mxu0 0.0
    %202 = vmatpush1.msra.mxu0 0.0
    %203 = vmatprep.subr.mxu0 0.0
    %204 = vmatpush1.msra.mxu0 0.0
    %205 = vmatprep.subr.mxu0 0.0
    %206 = vmatpush1.msra.mxu0 0.0
    %207 = vmatprep.subr.mxu0 0.0
    %208 = vmatpush1.msra.mxu0 0.0
    %209 = vmatprep.subr.mxu0 0.0
    %210 = vmatpush1.msra.mxu0 0.0
    %211 = vmatprep.subr.mxu0 0.0
    %212 = vmatpush1.msra.mxu0 0.0
    %213 = vmatprep.subr.mxu0 0.0
    %214 = vmatpush1.msra.mxu0 0.0
    %215 = vmatprep.subr.mxu0 0.0
    %216 = vmatpush1.msra.mxu0 0.0
    %217 = vmatprep.subr.mxu0 0.0
    %218 = vmatpush1.msra.mxu0 0.0
    %219 = vmatprep.subr.mxu0 0.0
    %220 = vmatpush1.msra.mxu0 0.0
    %221 = vmatprep.subr.mxu0 0.0
    %222 = vmatpush1.msra.mxu0 0.0
    %223 = vmatprep.subr.mxu0 0.0
    %224 = vmatpush1.msra.mxu0 0.0
    %225 = vmatprep.mubr.f32.mxu0 0.0
    %226 = vmatmul.mubr.f32.gmra.mrb[0].mxu0 %v29
    %v227 = vpop.f32.mrb[0].mxu0
    %v228 = vadd.f32 0.0, %v227
    %v229 = vpop.f32.mrb[0].mxu0
    %230 = vmatprep.mubr.f32.mxu0 0.0
    %231 = vmatmul.mubr.f32.gmra.mrb[0].mxu0 %v32
    %v232 = vpop.f32.mrb[0].mxu0
    %v233 = vadd.f32 0.0, %v232
    %v234 = vpop.f32.mrb[0].mxu0
    %235 = vmatprep.mubr.f32.mxu0 0.0
    %236 = vmatmul.mubr.f32.gmra.mrb[0].mxu0 %v35
    %v237 = vpop.f32.mrb[0].mxu0
    %v238 = vadd.f32 0.0, %v237
    %v239 = vpop.f32.mrb[0].mxu0
    %240 = vmatprep.mubr.f32.mxu0 0.0
    %241 = vmatmul.mubr.f32.gmra.mrb[0].mxu0 %v38
    %v242 = vpop.f32.mrb[0].mxu0
    %v243 = vadd.f32 0.0, %v242
    %v244 = vpop.f32.mrb[0].mxu0
    %245 = vmatprep.mubr.f32.mxu0 0.0
    %246 = vmatmul.mubr.f32.gmra.mrb[0].mxu0 %v41
    %v247 = vpop.f32.mrb[0].mxu0
    %v248 = vadd.f32 0.0, %v247
    %v249 = vpop.f32.mrb[0].mxu0
    %250 = vmatprep.mubr.f32.mxu0 0.0
    %251 = vmatmul.mubr.f32.gmra.mrb[0].mxu0 %v44
    %v252 = vpop.f32.mrb[0].mxu0
    %v253 = vadd.f32 0.0, %v252
    %v254 = vpop.f32.mrb[0].mxu0
    %255 = vmatprep.mubr.f32.mxu0 0.0
    %256 = vmatmul.mubr.f32.gmra.mrb[0].mxu0 %v47
    %v257 = vpop.f32.mrb[0].mxu0
    %v258 = vadd.f32 0.0, %v257
    %v259 = vpop.f32.mrb[0].mxu0
    %260 = vmatprep.mubr.f32.mxu0 0.0
    %261 = vmatmul.mubr.f32.gmra.mrb[0].mxu0 %v50
    %v262 = vpop.f32.mrb[0].mxu0
    %v263 = vadd.f32 0.0, %v262
    %v264 = vpop.f32.mrb[0].mxu0
    %265 = vdwg.mxu0
    %v266 = vlaneseq
    %v267 = vshrl.u32 %v266, 7
    %v268 = vadd.s32 %v267, 8
    %v269 = vadd.s32 %v267, 16
    %v270 = vadd.s32 %v267, 24
    %v271 = vadd.s32 %v267, 32
    %v272 = vadd.s32 %v267, 40
    %v273 = vadd.s32 %v267, 48
    %v274 = vadd.s32 %v267, 56
    %vm275 = vcmp.lt.s32.totalorder %v267, 0
    %v276 = vsub.s32 0, %v267
    %v277 = vsel %vm275, %v276, %v267
    %v278 = vshrl.u32 %v277, 3
    %v279 = vand.u32 %v277, 7
    %v280 = vsub.s32 0, %v279
    %v281 = vsel %vm275, %v280, %v279
    %vm282 = vcmp.lt.s32.totalorder %v268, 0
    %v283 = vsub.s32 0, %v268
    %v284 = vsel %vm282, %v283, %v268
    %v285 = vshrl.u32 %v284, 3
    %v286 = vand.u32 %v284, 7
    %v287 = vsub.s32 0, %v286
    %v288 = vsel %vm282, %v287, %v286
    %vm289 = vcmp.lt.s32.totalorder %v269, 0
    %v290 = vsub.s32 0, %v269
    %v291 = vsel %vm289, %v290, %v269
    %v292 = vshrl.u32 %v291, 3
    %v293 = vand.u32 %v291, 7
    %v294 = vsub.s32 0, %v293
    %v295 = vsel %vm289, %v294, %v293
    %vm296 = vcmp.lt.s32.totalorder %v270, 0
    %v297 = vsub.s32 0, %v270
    %v298 = vsel %vm296, %v297, %v270
    %v299 = vshrl.u32 %v298, 3
    %v300 = vand.u32 %v298, 7
    %v301 = vsub.s32 0, %v300
    %v302 = vsel %vm296, %v301, %v300
    %vm303 = vcmp.lt.s32.totalorder %v271, 0
    %v304 = vsub.s32 0, %v271
    %v305 = vsel %vm303, %v304, %v271
    %v306 = vshrl.u32 %v305, 3
    %v307 = vand.u32 %v305, 7
    %v308 = vsub.s32 0, %v307
    %v309 = vsel %vm303, %v308, %v307
    %vm310 = vcmp.lt.s32.totalorder %v272, 0
    %v311 = vsub.s32 0, %v272
    %v312 = vsel %vm310, %v311, %v272
    %v313 = vshrl.u32 %v312, 3
    %v314 = vand.u32 %v312, 7
    %v315 = vsub.s32 0, %v314
    %v316 = vsel %vm310, %v315, %v314
    %vm317 = vcmp.lt.s32.totalorder %v273, 0
    %v318 = vsub.s32 0, %v273
    %v319 = vsel %vm317, %v318, %v273
    %v320 = vshrl.u32 %v319, 3
    %v321 = vand.u32 %v319, 7
    %v322 = vsub.s32 0, %v321
    %v323 = vsel %vm317, %v322, %v321
    %vm324 = vcmp.lt.s32.totalorder %v274, 0
    %v325 = vsub.s32 0, %v274
    %v326 = vsel %vm324, %v325, %v274
    %v327 = vshrl.u32 %v326, 3
    %v328 = vand.u32 %v326, 7
    %v329 = vsub.s32 0, %v328
    %v330 = vsel %vm324, %v329, %v328
    %vm331 = vcmp.ne.s32.totalorder %v281, 0
    %vm332 = vcmp.ne.s32.totalorder %v288, 0
    %vm333 = vcmp.ne.s32.totalorder %v295, 0
    %vm334 = vcmp.ne.s32.totalorder %v302, 0
    %vm335 = vcmp.ne.s32.totalorder %v309, 0
    %vm336 = vcmp.ne.s32.totalorder %v316, 0
    %vm337 = vcmp.ne.s32.totalorder %v323, 0
    %vm338 = vcmp.ne.s32.totalorder %v330, 0
    %vm339 = vcmp.lt.s32.totalorder %v281, 0
    %vm340 = vcmp.lt.s32.totalorder %v288, 0
    %vm341 = vcmp.lt.s32.totalorder %v295, 0
    %vm342 = vcmp.lt.s32.totalorder %v302, 0
    %vm343 = vcmp.lt.s32.totalorder %v309, 0
    %vm344 = vcmp.lt.s32.totalorder %v316, 0
    %vm345 = vcmp.lt.s32.totalorder %v323, 0
    %vm346 = vcmp.lt.s32.totalorder %v330, 0
    %vm347 = vmand %vm339, %vm331
    %vm348 = vmand %vm340, %vm332
    %vm349 = vmand %vm341, %vm333
    %vm350 = vmand %vm342, %vm334
    %vm351 = vmand %vm343, %vm335
    %vm352 = vmand %vm344, %vm336
    %vm353 = vmand %vm345, %vm337
    %vm354 = vmand %vm346, %vm338
    %v355 = vadd.s32 %v281, 8
    %v356 = vadd.s32 %v288, 8
    %v357 = vadd.s32 %v295, 8
    %v358 = vadd.s32 %v302, 8
    %v359 = vadd.s32 %v309, 8
    %v360 = vadd.s32 %v316, 8
    %v361 = vadd.s32 %v323, 8
    %v362 = vadd.s32 %v330, 8
    %v363 = vsel %vm347, %v355, %v281
    %v364 = vsel %vm348, %v356, %v288
    %v365 = vsel %vm349, %v357, %v295
    %v366 = vsel %vm350, %v358, %v302
    %v367 = vsel %vm351, %v359, %v309
    %v368 = vsel %vm352, %v360, %v316
    %v369 = vsel %vm353, %v361, %v323
    %v370 = vsel %vm354, %v362, %v330
    %v371 = vlaneseq
    %v372 = vand.u32 %v371, 127
    %vm373 = vcmp.eq.s32.totalorder %v363, 7
    %vm374 = vcmp.eq.s32.totalorder %v364, 7
    %vm375 = vcmp.eq.s32.totalorder %v365, 7
    %vm376 = vcmp.eq.s32.totalorder %v366, 7
    %vm377 = vcmp.eq.s32.totalorder %v367, 7
    %vm378 = vcmp.eq.s32.totalorder %v368, 7
    %vm379 = vcmp.eq.s32.totalorder %v369, 7
    %vm380 = vcmp.eq.s32.totalorder %v370, 7
    %vm381 = vcmp.eq.s32.totalorder %v372, 7
    %v382 = vsel %vm373, 0.5, 0.33333334
    %v383 = vsel %vm374, 0.5, 0.33333334
    %v384 = vsel %vm375, 0.5, 0.33333334
    %v385 = vsel %vm376, 0.5, 0.33333334
    %v386 = vsel %vm377, 0.5, 0.33333334
    %v387 = vsel %vm378, 0.5, 0.33333334
    %v388 = vsel %vm379, 0.5, 0.33333334
    %v389 = vsel %vm380, 0.5, 0.33333334
    %v390 = vsel %vm381, 0.5, 0.33333334
    %v391 = vmul.f32 %v382, %v390
    %v392 = vmul.f32 %v383, %v390
    %v393 = vmul.f32 %v384, %v390
    %v394 = vmul.f32 %v385, %v390
    %v395 = vmul.f32 %v386, %v390
    %v396 = vmul.f32 %v387, %v390
    %v397 = vmul.f32 %v388, %v390
    %v398 = vmul.f32 %v389, %v390
    %vm399 = vmxor %vm373, 1
    %vm400 = vmxor %vm374, 1
    %vm401 = vmxor %vm375, 1
    %vm402 = vmxor %vm376, 1
    %vm403 = vmxor %vm377, 1
    %vm404 = vmxor %vm378, 1
    %vm405 = vmxor %vm379, 1
    %vm406 = vmxor %vm380, 1
    %vm415 = vcmask 1046528
    %v416 = vrot.slane %v228, 1
    %v417 = vrot.slane %v233, 1
    %v418 = vsel %vm415, %v416, %v417
    %v419 = vrot.slane %v238, 1
    %v420 = vsel %vm415, %v417, %v419
    %v421 = vrot.slane %v243, 1
    %v422 = vsel %vm415, %v419, %v421
    %v423 = vrot.slane %v248, 1
    %v424 = vsel %vm415, %v421, %v423
    %v425 = vrot.slane %v253, 1
    %v426 = vsel %vm415, %v423, %v425
    %v427 = vrot.slane %v258, 1
    %v428 = vsel %vm415, %v425, %v427
    %v429 = vrot.slane %v263, 1
    %v430 = vsel %vm415, %v427, %v429
    %v439 = vsel %vm399, %v418, 0.0
    %v440 = vsel %vm400, %v420, 0.0
    %v441 = vsel %vm401, %v422, 0.0
    %v442 = vsel %vm402, %v424, 0.0
    %v443 = vsel %vm403, %v426, 0.0
    %v444 = vsel %vm404, %v428, 0.0
    %v445 = vsel %vm405, %v430, 0.0
    %v446 = vsel %vm406, %v429, 0.0
    %v447 = vadd.f32 %v119, %v439
    %v448 = vadd.f32 %v124, %v440
    %v449 = vadd.f32 %v129, %v441
    %v450 = vadd.f32 %v134, %v442
    %v451 = vadd.f32 %v139, %v443
    %v452 = vadd.f32 %v144, %v444
    %v453 = vadd.f32 %v149, %v445
    %v454 = vadd.f32 %v154, %v446
    %v455 = vmul.f32 %v447, %v391
    %v456 = vmul.f32 %v448, %v392
    %v457 = vmul.f32 %v449, %v393
    %v458 = vmul.f32 %v450, %v394
    %v459 = vmul.f32 %v451, %v395
    %v460 = vmul.f32 %v452, %v396
    %v461 = vmul.f32 %v453, %v397
    %v462 = vmul.f32 %v454, %v398
    %vm463 = vcmask 64512
    %464 = vst.msk [vmem:[#allocation2] sm:$0xff] %vm463, %v455
    %465 = vst.msk [vmem:[#allocation2 + $0x8] sm:$0xff] %vm463, %v456
    %466 = vst.msk [vmem:[#allocation2 + $0x10] sm:$0xff] %vm463, %v457
    %467 = vst.msk [vmem:[#allocation2 + $0x18] sm:$0xff] %vm463, %v458
    %468 = vst.msk [vmem:[#allocation2 + $0x20] sm:$0xff] %vm463, %v459
    %469 = vst.msk [vmem:[#allocation2 + $0x28] sm:$0xff] %vm463, %v460
    %470 = vst.msk [vmem:[#allocation2 + $0x30] sm:$0xff] %vm463, %v461
    %vm471 = vcmask 63488
    %472 = vst.msk [vmem:[#allocation2 + $0x38] sm:$0x7f] %vm471, %v462
    %v473 = vmul.f32 %v154, %v398
    %vm474 = vcmask 64519
    %475 = vst.msk [vmem:[#allocation2 + $0x38] sm:$0x80] %vm474, %v473
    // Predicated region
    $region14: #{avg_pool_pad.1} parent=1 // pred_check
      _
    $region15: #{avg_pool_pad.1} parent=1 // pred_check_branch
      %477 = sbr.rel (0) target = $region17
    $region16: #{avg_pool_pad.1} parent=1 // pred_region
      %s479 = ssub.s32 1024, 1024
      %480 = vsyncadd [#allocation3], %s479
      %s481 = sshll.u32 [#allocation2], 4
      %s482 = int_to_ptr.vmem [resolvable:$true] %s481
      %487 = dma.vmem_to_hbm [thread:$0]  %s482, 1024, %s3, [#allocation3], 128, 128, 8
    $region17: #{avg_pool_pad.1} parent=1 // pred_fallthru
      _
    // Predicated region
    $region18: #{avg_pool_pad.1} parent=1 // pred_check
      _
    $region19: #{avg_pool_pad.1} parent=1 // pred_check_branch
      %489 = sbr.rel (0) target = $region21
    $region20: #{avg_pool_pad.1} parent=1 // pred_region
      %490 = dma.done [#allocation3], 1024
    $region21: #{avg_pool_pad.1} parent=1 // pred_fallthru
      _
    %491 = vsyncpa [#allocation3], 1

</llo_original>
